<compile_context>
chip_gen: v7x
topology: tpu7x:2x2x1
jax: 0.10.0
libtpu: 0.0.40
codegen_flags: <defaults>
</compile_context>

<pallas_src>
import jax
import jax.numpy as jnp
from jax.experimental import pallas as pl
from jax.experimental.pallas import tpu as pltpu

IN_DIM = 128
HID_DIM = 64
OUT_DIM = 1
NEG_SLOPE = 0.2


def _leaky_relu(x, slope):
    return jnp.where(x > 0, x, slope * x)


def _round_up(x, m):
    return (x + m - 1) // m * m


def mask_net_kernel(x_ref, w1_ref, w2_ref, p_ref, b3_ref, o_ref):
    # x_ref : (tm, 128) f32   -- raw HBM stream, cast to bf16 in-register
    # w1_ref: (128, 64) bf16  -- VMEM-resident (constant index map)
    # w2_ref: (64, 64)  bf16  -- VMEM-resident
    # p_ref : (3, 64)   f32   -- packed [b1 ; b2 ; w3-row]
    # b3_ref: (1,)      f32   -- SMEM scalar
    x = x_ref[...].astype(jnp.bfloat16)           # cheap VPU cast, hidden under DMA

    # fc1: bf16 x bf16 on the MXU, f32 accumulation; f32 epilogue.
    h1 = jnp.dot(x, w1_ref[...], preferred_element_type=jnp.float32)
    h1 = _leaky_relu(h1 + p_ref[0:1, :], NEG_SLOPE)            # (tm, 64) f32

    # fc2: activations quantized to bf16 for the native MXU path, f32 accumulate.
    h2 = jnp.dot(h1.astype(jnp.bfloat16), w2_ref[...],
                 preferred_element_type=jnp.float32)
    h2 = _leaky_relu(h2 + p_ref[1:2, :], NEG_SLOPE)            # (tm, 64) f32

    # fc3 (single output column): VPU multiply + XLU lane reduce, no MXU pass.
    h3 = jnp.sum(h2 * p_ref[2:3, :], axis=-1, keepdims=True) + b3_ref[0]

    o_ref[...] = jax.nn.sigmoid(h3).astype(o_ref.dtype)        # (tm, 1)


def _choose_row_tile(M, tm_max):
    """Row tile: multiple of 16, <= tm_max, >= 256, ~16 grid steps when possible."""
    assert tm_max % 16 == 0, "row tile cap must be a multiple of 16"
    target = _round_up(pl.cdiv(M, 16), 16)     # keep ~16 grid steps (>=8 per v7x TC)
    tm_eff = max(256, min(tm_max, target))     # but never a tiny tile
    tm_eff = min(tm_eff, _round_up(M, 16))     # and never more rows than exist
    return tm_eff


def mask_net_forward(point_features, params, *, tm=8192):
    """point_features: (B, N, 128) float32 -> confidence (B, N, 1) float32."""
    B, N, C = point_features.shape
    assert C == IN_DIM
    M = B * N

    # Zero-copy wrapper: free reshape, no cast pass, no padding pass.
    x2d = point_features.reshape(M, C).astype(jnp.float32)

    w1, b1, w2, b2, w3, b3 = params
    # PyTorch-style (out, in) weights -> (in, out); matmul operands bf16,
    # everything feeding the f32 epilogue stays f32.
    w1t = w1.T.astype(jnp.bfloat16)                           # (128, 64)
    w2t = w2.T.astype(jnp.bfloat16)                           # (64, 64)
    packed = jnp.stack(
        [b1.astype(jnp.float32),
         b2.astype(jnp.float32),
         w3.reshape(HID_DIM).astype(jnp.float32)], axis=0)    # (3, 64)
    b3s = b3.reshape(OUT_DIM).astype(jnp.float32)             # (1,) SMEM scalar

    tm_eff = _choose_row_tile(M, tm)
    grid = (pl.cdiv(M, tm_eff),)                               # partial last block masked

    out = pl.pallas_call(
        mask_net_kernel,
        out_shape=jax.ShapeDtypeStruct((M, OUT_DIM), jnp.float32),
        grid=grid,
        in_specs=[
            pl.BlockSpec((tm_eff, IN_DIM), lambda i: (i, 0)),   # x tile (f32 stream)
            pl.BlockSpec((IN_DIM, HID_DIM), lambda i: (0, 0)),  # w1^T (resident)
            pl.BlockSpec((HID_DIM, HID_DIM), lambda i: (0, 0)), # w2^T (resident)
            pl.BlockSpec((3, HID_DIM), lambda i: (0, 0)),       # packed b1/b2/w3
            pl.BlockSpec(memory_space=pltpu.MemorySpace.SMEM),  # b3 scalar
        ],
        out_specs=pl.BlockSpec((tm_eff, OUT_DIM), lambda i: (i, 0)),
        compiler_params=pltpu.CompilerParams(
            dimension_semantics=("parallel",),       # shards grid across v7x's 2 TCs
            vmem_limit_bytes=48 * 1024 * 1024,       # headroom for 8192-row f32 tiles
        ),
    )(x2d, w1t, w2t, packed, b3s)

    return out.reshape(B, N, OUT_DIM)


def init_params(key):
    """Deterministic init mimicking PyTorch Linear default U(-1/sqrt(fan_in))."""
    ks = jax.random.split(key, 6)

    def lin(kw, kb, fan_in, fan_out):
        bound = 1.0 / jnp.sqrt(fan_in)
        w = jax.random.uniform(kw, (fan_out, fan_in), jnp.float32, -bound, bound)
        b = jax.random.uniform(kb, (fan_out,), jnp.float32, -bound, bound)
        return w, b

    w1, b1 = lin(ks[0], ks[1], IN_DIM, HID_DIM)
    w2, b2 = lin(ks[2], ks[3], HID_DIM, HID_DIM)
    w3, b3 = lin(ks[4], ks[5], HID_DIM, OUT_DIM)
    return (w1, b1, w2, b2, w3, b3)


def reference_forward_f32(point_features, params):
    """Pure f32 reference matching the PyTorch module."""
    w1, b1, w2, b2, w3, b3 = params
    h1 = _leaky_relu(point_features @ w1.T + b1, NEG_SLOPE)
    h2 = _leaky_relu(h1 @ w2.T + b2, NEG_SLOPE)
    h3 = jnp.sum(h2 * w3.reshape(1, 1, HID_DIM), axis=-1, keepdims=True) + b3
    return jax.nn.sigmoid(h3)


def reference_forward_bf16(point_features, params):
    """Reference replicating the kernel's bf16 operand quantization."""
    w1, b1, w2, b2, w3, b3 = params
    f32 = jnp.float32
    x = point_features.astype(jnp.bfloat16).astype(f32)
    w1q = w1.astype(jnp.bfloat16).astype(f32)
    w2q = w2.astype(jnp.bfloat16).astype(f32)
    h1 = _leaky_relu(x @ w1q.T + b1, NEG_SLOPE)
    h1 = h1.astype(jnp.bfloat16).astype(f32)
    h2 = _leaky_relu(h1 @ w2q.T + b2, NEG_SLOPE)
    h3 = jnp.sum(h2 * w3.reshape(1, 1, HID_DIM), axis=-1, keepdims=True) + b3
    return jax.nn.sigmoid(h3)


if __name__ == "__main__":
    key = jax.random.PRNGKey(0)
    k_param, k_x1, k_x2 = jax.random.split(key, 3)

    params = init_params(k_param)

    # Test 1: small (B, N, 128) input, single grid step.
    B, N = 2, 128
    pf1 = jax.random.normal(k_x1, (B, N, IN_DIM), jnp.float32)
    conf1 = jax.block_until_ready(mask_net_forward(pf1, params))
    assert conf1.shape == (B, N, 1)
    assert jnp.allclose(conf1, reference_forward_bf16(pf1, params),
                        atol=1e-3, rtol=1e-3)
    assert jnp.allclose(conf1, reference_forward_f32(pf1, params),
                        atol=2e-2, rtol=2e-2)

    # Test 2: B*N not a multiple of the tile -> exercises multi-step grid with a
    # masked partial trailing block (no wrapper-side padding).
    B2, N2 = 3, 1000
    pf2 = jax.random.normal(k_x2, (B2, N2, IN_DIM), jnp.float32)
    conf2 = jax.block_until_ready(mask_net_forward(pf2, params))
    assert conf2.shape == (B2, N2, 1)
    assert jnp.allclose(conf2, reference_forward_bf16(pf2, params),
                        atol=1e-3, rtol=1e-3)

    print("KERNEL_OK")
</pallas_src>

<mosaic_0001>
module attributes {stable_mosaic.version = 11 : i64} {
  func.func @mask_net_kernel(%arg0: i32, %arg1: memref<256x128xf32, #tpu.memory_space<vmem>>, %arg2: memref<128x64xbf16, #tpu.memory_space<vmem>>, %arg3: memref<64x64xbf16, #tpu.memory_space<vmem>>, %arg4: memref<3x64xf32, #tpu.memory_space<vmem>>, %arg5: memref<1xf32, #tpu.memory_space<smem>>, %arg6: memref<256x1xf32, #tpu.memory_space<vmem>>) attributes {dimension_semantics = [#tpu.dimension_semantics<parallel>], iteration_bounds = array<i64: 1>, scalar_prefetch = 0 : i64, scratch_operands = 0 : i64, tpu.core_type = #tpu.core_type<tc>, window_params = [{transform_indices = @transform_0, window_bounds = array<i64: 256, 128>}, {pipeline_mode = #tpu.pipeline_mode<synchronous>, transform_indices = @transform_1, window_bounds = array<i64: 128, 64>}, {pipeline_mode = #tpu.pipeline_mode<synchronous>, transform_indices = @transform_2, window_bounds = array<i64: 64, 64>}, {pipeline_mode = #tpu.pipeline_mode<synchronous>, transform_indices = @transform_3, window_bounds = array<i64: 3, 64>}, {transform_indices = @transform_4, window_bounds = array<i64: 1>}, {transform_indices = @transform_5, window_bounds = array<i64: 256, 1>}]} {
    %c0 = arith.constant 0 : index
    %c0_0 = arith.constant 0 : index
    %0 = vector.load %arg1[%c0, %c0_0] : memref<256x128xf32, #tpu.memory_space<vmem>>, vector<256x128xf32>
    %1 = arith.truncf %0 : vector<256x128xf32> to vector<256x128xbf16>
    %c0_1 = arith.constant 0 : index
    %c0_2 = arith.constant 0 : index
    %2 = vector.load %arg2[%c0_1, %c0_2] : memref<128x64xbf16, #tpu.memory_space<vmem>>, vector<128x64xbf16>
    %cst = arith.constant dense<0.000000e+00> : vector<256x64xf32>
    %3 = tpu.matmul %1, %2, %cst {dimension_numbers = #tpu.dot_dimension_numbers<[1], [0], [0], [1], [0, 0, 1, 1], [], []>} : vector<256x128xbf16>, vector<128x64xbf16>, vector<256x64xf32> -> vector<256x64xf32>
    %c0_3 = arith.constant 0 : index
    %c0_4 = arith.constant 0 : index
    %4 = vector.load %arg4[%c0_3, %c0_4] : memref<3x64xf32, #tpu.memory_space<vmem>>, vector<1x64xf32>
    %5 = vector.broadcast %4 : vector<1x64xf32> to vector<256x64xf32>
    %6 = arith.addf %3, %5 : vector<256x64xf32>
    %cst_5 = arith.constant 0.000000e+00 : f32
    %7 = vector.broadcast %cst_5 : f32 to vector<256x64xf32>
    %8 = arith.cmpf ogt, %6, %7 : vector<256x64xf32>
    %cst_6 = arith.constant 2.000000e-01 : f32
    %9 = vector.broadcast %cst_6 : f32 to vector<256x64xf32>
    %10 = arith.mulf %9, %6 : vector<256x64xf32>
    %11 = arith.select %8, %6, %10 : vector<256x64xi1>, vector<256x64xf32>
    %12 = arith.truncf %11 : vector<256x64xf32> to vector<256x64xbf16>
    %c0_7 = arith.constant 0 : index
    %c0_8 = arith.constant 0 : index
    %13 = vector.load %arg3[%c0_7, %c0_8] : memref<64x64xbf16, #tpu.memory_space<vmem>>, vector<64x64xbf16>
    %cst_9 = arith.constant dense<0.000000e+00> : vector<256x64xf32>
    %14 = tpu.matmul %12, %13, %cst_9 {dimension_numbers = #tpu.dot_dimension_numbers<[1], [0], [0], [1], [0, 0, 1, 1], [], []>} : vector<256x64xbf16>, vector<64x64xbf16>, vector<256x64xf32> -> vector<256x64xf32>
    %c1 = arith.constant 1 : index
    %c0_10 = arith.constant 0 : index
    %15 = vector.load %arg4[%c1, %c0_10] : memref<3x64xf32, #tpu.memory_space<vmem>>, vector<1x64xf32>
    %16 = vector.broadcast %15 : vector<1x64xf32> to vector<256x64xf32>
    %17 = arith.addf %14, %16 : vector<256x64xf32>
    %cst_11 = arith.constant 0.000000e+00 : f32
    %18 = vector.broadcast %cst_11 : f32 to vector<256x64xf32>
    %19 = arith.cmpf ogt, %17, %18 : vector<256x64xf32>
    %cst_12 = arith.constant 2.000000e-01 : f32
    %20 = vector.broadcast %cst_12 : f32 to vector<256x64xf32>
    %21 = arith.mulf %20, %17 : vector<256x64xf32>
    %22 = arith.select %19, %17, %21 : vector<256x64xi1>, vector<256x64xf32>
    %c2 = arith.constant 2 : index
    %c0_13 = arith.constant 0 : index
    %23 = vector.load %arg4[%c2, %c0_13] : memref<3x64xf32, #tpu.memory_space<vmem>>, vector<1x64xf32>
    %24 = vector.broadcast %23 : vector<1x64xf32> to vector<256x64xf32>
    %25 = arith.mulf %22, %24 : vector<256x64xf32>
    %cst_14 = arith.constant dense<0.000000e+00> : vector<256xf32>
    %26 = vector.multi_reduction <add>, %25, %cst_14 [1] : vector<256x64xf32> to vector<256xf32>
    %27 = vector.shape_cast %26 : vector<256xf32> to vector<256x1xf32>
    %c0_15 = arith.constant 0 : index
    %28 = memref.load %arg5[%c0_15] : memref<1xf32, #tpu.memory_space<smem>>
    %29 = vector.broadcast %28 : f32 to vector<256x1xf32>
    %30 = arith.addf %27, %29 : vector<256x1xf32>
    %31 = arith.negf %30 : vector<256x1xf32>
    %32 = math.exp %31 : vector<256x1xf32>
    %cst_16 = arith.constant 1.000000e+00 : f32
    %33 = vector.broadcast %cst_16 : f32 to vector<256x1xf32>
    %34 = arith.addf %33, %32 : vector<256x1xf32>
    %35 = arith.divf %33, %34 : vector<256x1xf32>
    %c0_17 = arith.constant 0 : index
    %c0_18 = arith.constant 0 : index
    %36 = vector.load %arg6[%c0_17, %c0_18] : memref<256x1xf32, #tpu.memory_space<vmem>>, vector<256x1xf32>
    tpu.vector_store %arg6[%c0_17, %c0_18], %35 {strides = array<i32>} : memref<256x1xf32, #tpu.memory_space<vmem>>, vector<256x1xf32>,
    return
  }
  func.func @transform_0(%arg0: i32) -> (i32, i32) {
    %c0_i32 = arith.constant 0 : i32
    %c0_i32_0 = arith.constant 0 : i32
    return %arg0, %c0_i32 : i32, i32
  }
  func.func @transform_1(%arg0: i32) -> (i32, i32) {
    %c0_i32 = arith.constant 0 : i32
    %c0_i32_0 = arith.constant 0 : i32
    %c0_i32_1 = arith.constant 0 : i32
    return %c0_i32, %c0_i32_0 : i32, i32
  }
  func.func @transform_2(%arg0: i32) -> (i32, i32) {
    %c0_i32 = arith.constant 0 : i32
    %c0_i32_0 = arith.constant 0 : i32
    %c0_i32_1 = arith.constant 0 : i32
    return %c0_i32, %c0_i32_0 : i32, i32
  }
  func.func @transform_3(%arg0: i32) -> (i32, i32) {
    %c0_i32 = arith.constant 0 : i32
    %c0_i32_0 = arith.constant 0 : i32
    %c0_i32_1 = arith.constant 0 : i32
    return %c0_i32, %c0_i32_0 : i32, i32
  }
  func.func @transform_4(%arg0: i32) -> i32 {
    %c0_i32 = arith.constant 0 : i32
    %c0_i32_0 = arith.constant 0 : i32
    return %c0_i32 : i32
  }
  func.func @transform_5(%arg0: i32) -> (i32, i32) {
    %c0_i32 = arith.constant 0 : i32
    %c0_i32_0 = arith.constant 0 : i32
    return %arg0, %c0_i32 : i32, i32
  }
}

</mosaic_0001>

<llo_original>
// kernel: tpu_custom_call.1
$region0: #{tpu_custom_call.1}
  #allocation0 [shape = 'u32[]', space=smem, size = 0x4, offset = 0x4, fixed_abs, tag = 'smem constant byte address 0x4 - core index']
  #allocation1 [shape = 'u32[144,128]{1,0:T(1,128)}', space=vmem, size = 0x12000, scoped, tag = 'internal scratch']
  #allocation2 [shape = 'f32[1]{0:T(128)S(6)}', space=smem, size = 0x200, scoped, tag = 'scoped memory for tpu_custom_call.1']
  %s0 = inlined_call_operand.hbm [shape: f32[256,128], index: 0, kind: input, shape index: {}]
  %s1 = inlined_call_operand.vmem [shape: bf16[128,64], index: 1, kind: input, shape index: {}]
  %s2 = inlined_call_operand.vmem [shape: bf16[64,64], index: 2, kind: input, shape index: {}]
  %s3 = inlined_call_operand.vmem [shape: f32[3,64], index: 3, kind: input, shape index: {}]
  %s4 = inlined_call_operand.<no memory space> [shape: f32[1], index: 4, kind: input, shape index: {}]
  %s5 = inlined_call_operand.vmem [shape: f32[256,1], index: 5, kind: output, shape index: {}]
  %s6 = sld [smem:[#allocation0]]
  $region34: #{tpu_custom_call.1} parent=0
    _
  %s8 = ssub.s32 1, %s6
  %s9 = scalar_select 0, %s8, %s6
  %10 = sst [smem:[#allocation2]] %s4
  $region1: #{tpu_custom_call.1} parent=0
    #allocation3 [shape = 'u8[131072]{0}', space=vmem, size = 0x20000, scoped, tag = 'input window, operand 0, single buffered']
    #allocation4 [shape = 's32[1]{0}', space=sflag, size = 0x4, scoped, tag = 'scoped memory for tpu_custom_call.1']
    %11 = vsyncpa [#allocation4], 0
    // Predicated region
    $region2: #{tpu_custom_call.1} parent=1 // pred_check
      _
    $region3: #{tpu_custom_call.1} parent=1 // pred_check_branch
      %13 = sbr.rel (0) target = $region5
    $region4: #{tpu_custom_call.1} parent=1 // pred_region
      %s15 = ssub.s32 4096, 4096
      %16 = vsyncadd [#allocation4], %s15
      %s17 = sshll.u32 [#allocation3], 4
      %s18 = int_to_ptr.vmem [resolvable:$true] %s17
      %23 = dma.hbm_to_vmem [thread:$0]  %s0, 4096, %s18, [#allocation4], 128, 128, 8
    $region5: #{tpu_custom_call.1} parent=1 // pred_fallthru
      _
    // Predicated region
    $region6: #{tpu_custom_call.1} parent=1 // pred_check
      _
    $region7: #{tpu_custom_call.1} parent=1 // pred_check_branch
      %25 = sbr.rel (0) target = $region9
    $region8: #{tpu_custom_call.1} parent=1 // pred_region
      _
    $region9: #{tpu_custom_call.1} parent=1 // pred_fallthru
      _
    // Predicated region
    $region10: #{tpu_custom_call.1} parent=1 // pred_check
      _
    $region11: #{tpu_custom_call.1} parent=1 // pred_check_branch
      %27 = sbr.rel (0) target = $region13
    $region12: #{tpu_custom_call.1} parent=1 // pred_region
      _
    $region13: #{tpu_custom_call.1} parent=1 // pred_fallthru
      _
    // Predicated region
    $region14: #{tpu_custom_call.1} parent=1 // pred_check
      _
    $region15: #{tpu_custom_call.1} parent=1 // pred_check_branch
      %29 = sbr.rel (0) target = $region17
    $region16: #{tpu_custom_call.1} parent=1 // pred_region
      _
    $region17: #{tpu_custom_call.1} parent=1 // pred_fallthru
      _
    // Predicated region
    $region18: #{tpu_custom_call.1} parent=1 // pred_check
      _
    $region19: #{tpu_custom_call.1} parent=1 // pred_check_branch
      %31 = sbr.rel (0) target = $region21
    $region20: #{tpu_custom_call.1} parent=1 // pred_region
      _
    $region21: #{tpu_custom_call.1} parent=1 // pred_fallthru
      _
    // Predicated region
    $region22: #{tpu_custom_call.1} parent=1 // pred_check
      _
    $region23: #{tpu_custom_call.1} parent=1 // pred_check_branch
      %33 = sbr.rel (0) target = $region25
    $region24: #{tpu_custom_call.1} parent=1 // pred_region
      %34 = dma.done [#allocation4], 4096
    $region25: #{tpu_custom_call.1} parent=1 // pred_fallthru
      _
    %v36 = vld [vmem:[#allocation3] sm:$0xff]
    %v37 = vld [vmem:[#allocation3 + $0x8] sm:$0xff]
    %v38 = vld [vmem:[#allocation3 + $0x10] sm:$0xff]
    %v39 = vld [vmem:[#allocation3 + $0x18] sm:$0xff]
    %v40 = vld [vmem:[#allocation3 + $0x20] sm:$0xff]
    %v41 = vld [vmem:[#allocation3 + $0x28] sm:$0xff]
    %v42 = vld [vmem:[#allocation3 + $0x30] sm:$0xff]
    %v43 = vld [vmem:[#allocation3 + $0x38] sm:$0xff]
    %v44 = vld [vmem:[#allocation3 + $0x40] sm:$0xff]
    %v45 = vld [vmem:[#allocation3 + $0x48] sm:$0xff]
    %v46 = vld [vmem:[#allocation3 + $0x50] sm:$0xff]
    %v47 = vld [vmem:[#allocation3 + $0x58] sm:$0xff]
    %v48 = vld [vmem:[#allocation3 + $0x60] sm:$0xff]
    %v49 = vld [vmem:[#allocation3 + $0x68] sm:$0xff]
    %v50 = vld [vmem:[#allocation3 + $0x70] sm:$0xff]
    %v51 = vld [vmem:[#allocation3 + $0x78] sm:$0xff]
    %v52 = vld [vmem:[#allocation3 + $0x80] sm:$0xff]
    %v53 = vld [vmem:[#allocation3 + $0x88] sm:$0xff]
    %v54 = vld [vmem:[#allocation3 + $0x90] sm:$0xff]
    %v55 = vld [vmem:[#allocation3 + $0x98] sm:$0xff]
    %v56 = vld [vmem:[#allocation3 + $0xa0] sm:$0xff]
    %v57 = vld [vmem:[#allocation3 + $0xa8] sm:$0xff]
    %v58 = vld [vmem:[#allocation3 + $0xb0] sm:$0xff]
    %v59 = vld [vmem:[#allocation3 + $0xb8] sm:$0xff]
    %v60 = vld [vmem:[#allocation3 + $0xc0] sm:$0xff]
    %v61 = vld [vmem:[#allocation3 + $0xc8] sm:$0xff]
    %v62 = vld [vmem:[#allocation3 + $0xd0] sm:$0xff]
    %v63 = vld [vmem:[#allocation3 + $0xd8] sm:$0xff]
    %v64 = vld [vmem:[#allocation3 + $0xe0] sm:$0xff]
    %v65 = vld [vmem:[#allocation3 + $0xe8] sm:$0xff]
    %v66 = vld [vmem:[#allocation3 + $0xf0] sm:$0xff]
    %v67 = vld [vmem:[#allocation3 + $0xf8] sm:$0xff]
    %v68 = vpack.c.bf16 %v37, %v36
    %v69 = vpack.c.bf16 %v39, %v38
    %v70 = vpack.c.bf16 %v41, %v40
    %v71 = vpack.c.bf16 %v43, %v42
    %v72 = vpack.c.bf16 %v45, %v44
    %v73 = vpack.c.bf16 %v47, %v46
    %v74 = vpack.c.bf16 %v49, %v48
    %v75 = vpack.c.bf16 %v51, %v50
    %v76 = vpack.c.bf16 %v53, %v52
    %v77 = vpack.c.bf16 %v55, %v54
    %v78 = vpack.c.bf16 %v57, %v56
    %v79 = vpack.c.bf16 %v59, %v58
    %v80 = vpack.c.bf16 %v61, %v60
    %v81 = vpack.c.bf16 %v63, %v62
    %v82 = vpack.c.bf16 %v65, %v64
    %v83 = vpack.c.bf16 %v67, %v66
    %v84 = vld [vmem:[%s1] sm:$0xf]
    %v85 = vld [vmem:[%s1 + $0x4] sm:$0xf]
    %v86 = vld [vmem:[%s1 + $0x8] sm:$0xf]
    %v87 = vld [vmem:[%s1 + $0xc] sm:$0xf]
    %v88 = vld [vmem:[%s1 + $0x10] sm:$0xf]
    %v89 = vld [vmem:[%s1 + $0x14] sm:$0xf]
    %v90 = vld [vmem:[%s1 + $0x18] sm:$0xf]
    %v91 = vld [vmem:[%s1 + $0x1c] sm:$0xf]
    %v92 = vld [vmem:[%s1 + $0x20] sm:$0xf]
    %v93 = vld [vmem:[%s1 + $0x24] sm:$0xf]
    %v94 = vld [vmem:[%s1 + $0x28] sm:$0xf]
    %v95 = vld [vmem:[%s1 + $0x2c] sm:$0xf]
    %v96 = vld [vmem:[%s1 + $0x30] sm:$0xf]
    %v97 = vld [vmem:[%s1 + $0x34] sm:$0xf]
    %v98 = vld [vmem:[%s1 + $0x38] sm:$0xf]
    %v99 = vld [vmem:[%s1 + $0x3c] sm:$0xf]
    %v100 = vld [vmem:[%s3] sm:$0x1]
    %v101 = vlaneseq
    %v102 = vshrl.u32 %v101, 7
    %v103 = vsub.s32 0, %v102
    %v104 = vrot.slane %v100, %v103
    %v121 = vunpack.c.l.b16 %v84
    %v122 = vunpack.c.l.b16 %v85
    %v123 = vunpack.c.l.b16 %v86
    %v124 = vunpack.c.l.b16 %v87
    %v125 = vunpack.c.l.b16 %v88
    %v126 = vunpack.c.l.b16 %v89
    %v127 = vunpack.c.l.b16 %v90
    %v128 = vunpack.c.l.b16 %v91
    %v129 = vunpack.c.l.b16 %v92
    %v130 = vunpack.c.l.b16 %v93
    %v131 = vunpack.c.l.b16 %v94
    %v132 = vunpack.c.l.b16 %v95
    %v133 = vunpack.c.l.b16 %v96
    %v134 = vunpack.c.l.b16 %v97
    %v135 = vunpack.c.l.b16 %v98
    %v136 = vunpack.c.l.b16 %v99
    %v137 = vpack.c.b16 %v122, %v121
    %v138 = vpack.c.b16 %v124, %v123
    %v139 = vpack.c.b16 %v126, %v125
    %v140 = vpack.c.b16 %v128, %v127
    %v141 = vpack.c.b16 %v130, %v129
    %v142 = vpack.c.b16 %v132, %v131
    %v143 = vpack.c.b16 %v134, %v133
    %v144 = vpack.c.b16 %v136, %v135
    %153 = vmatprep.subr.bf16.mxu0 0
    %154 = vmatpush1.bf16.msra.mxu0 %v137
    %155 = vmatprep.subr.bf16.mxu0 0
    %156 = vmatpush1.bf16.msra.mxu0 %v138
    %157 = vmatprep.subr.bf16.mxu0 0
    %158 = vmatpush1.bf16.msra.mxu0 %v139
    %159 = vmatprep.subr.bf16.mxu0 0
    %160 = vmatpush1.bf16.msra.mxu0 %v140
    %161 = vmatprep.subr.bf16.mxu0 0
    %162 = vmatpush1.bf16.msra.mxu0 %v141
    %163 = vmatprep.subr.bf16.mxu0 0
    %164 = vmatpush1.bf16.msra.mxu0 %v142
    %165 = vmatprep.subr.bf16.mxu0 0
    %166 = vmatpush1.bf16.msra.mxu0 %v143
    %167 = vmatprep.subr.bf16.mxu0 0
    %168 = vmatpush1.bf16.msra.mxu0 %v144
    %169 = vmatprep.subr.bf16.mxu0 0
    %170 = vmatpush1.bf16.msra.mxu0 0
    %171 = vmatprep.subr.bf16.mxu0 0
    %172 = vmatpush1.bf16.msra.mxu0 0
    %173 = vmatprep.subr.bf16.mxu0 0
    %174 = vmatpush1.bf16.msra.mxu0 0
    %175 = vmatprep.subr.bf16.mxu0 0
    %176 = vmatpush1.bf16.msra.mxu0 0
    %177 = vmatprep.subr.bf16.mxu0 0
    %178 = vmatpush1.bf16.msra.mxu0 0
    %179 = vmatprep.subr.bf16.mxu0 0
    %180 = vmatpush1.bf16.msra.mxu0 0
    %181 = vmatprep.subr.bf16.mxu0 0
    %182 = vmatpush1.bf16.msra.mxu0 0
    %183 = vmatprep.subr.bf16.mxu0 0
    %184 = vmatpush1.bf16.msra.mxu0 0
    %185 = vmatprep.mubr.bf16.mxu0 0
    %186 = vmatmul.mubr.bf16.gmra.mrb[0].mxu0 %v68
    %v187 = vpop.f32.mrb[0].mxu0
    %v188 = vadd.f32 %v104, %v187
    %v189 = vpop.f32.mrb[0].mxu0
    %v190 = vpop.f32.mrb[0].mxu0
    %v191 = vadd.f32 %v104, %v190
    %v192 = vpop.f32.mrb[0].mxu0
    %193 = vmatprep.mubr.bf16.mxu0 0
    %194 = vmatmul.mubr.bf16.gmra.mrb[0].mxu0 %v69
    %v195 = vpop.f32.mrb[0].mxu0
    %v196 = vadd.f32 %v104, %v195
    %v197 = vpop.f32.mrb[0].mxu0
    %v198 = vpop.f32.mrb[0].mxu0
    %v199 = vadd.f32 %v104, %v198
    %v200 = vpop.f32.mrb[0].mxu0
    %201 = vmatprep.mubr.bf16.mxu0 0
    %202 = vmatmul.mubr.bf16.gmra.mrb[0].mxu0 %v70
    %v203 = vpop.f32.mrb[0].mxu0
    %v204 = vadd.f32 %v104, %v203
    %v205 = vpop.f32.mrb[0].mxu0
    %v206 = vpop.f32.mrb[0].mxu0
    %v207 = vadd.f32 %v104, %v206
    %v208 = vpop.f32.mrb[0].mxu0
    %209 = vmatprep.mubr.bf16.mxu0 0
    %210 = vmatmul.mubr.bf16.gmra.mrb[0].mxu0 %v71
    %v211 = vpop.f32.mrb[0].mxu0
    %v212 = vadd.f32 %v104, %v211
    %v213 = vpop.f32.mrb[0].mxu0
    %v214 = vpop.f32.mrb[0].mxu0
    %v215 = vadd.f32 %v104, %v214
    %v216 = vpop.f32.mrb[0].mxu0
    %217 = vmatprep.mubr.bf16.mxu0 0
    %218 = vmatmul.mubr.bf16.gmra.mrb[0].mxu0 %v72
    %v219 = vpop.f32.mrb[0].mxu0
    %v220 = vadd.f32 %v104, %v219
    %v221 = vpop.f32.mrb[0].mxu0
    %v222 = vpop.f32.mrb[0].mxu0
    %v223 = vadd.f32 %v104, %v222
    %v224 = vpop.f32.mrb[0].mxu0
    %225 = vmatprep.mubr.bf16.mxu0 0
    %226 = vmatmul.mubr.bf16.gmra.mrb[0].mxu0 %v73
    %v227 = vpop.f32.mrb[0].mxu0
    %v228 = vadd.f32 %v104, %v227
    %v229 = vpop.f32.mrb[0].mxu0
    %v230 = vpop.f32.mrb[0].mxu0
    %v231 = vadd.f32 %v104, %v230
    %v232 = vpop.f32.mrb[0].mxu0
    %233 = vmatprep.mubr.bf16.mxu0 0
    %234 = vmatmul.mubr.bf16.gmra.mrb[0].mxu0 %v74
    %v235 = vpop.f32.mrb[0].mxu0
    %v236 = vadd.f32 %v104, %v235
    %v237 = vpop.f32.mrb[0].mxu0
    %v238 = vpop.f32.mrb[0].mxu0
    %v239 = vadd.f32 %v104, %v238
    %v240 = vpop.f32.mrb[0].mxu0
    %241 = vmatprep.mubr.bf16.mxu0 0
    %242 = vmatmul.mubr.bf16.gmra.mrb[0].mxu0 %v75
    %v243 = vpop.f32.mrb[0].mxu0
    %v244 = vadd.f32 %v104, %v243
    %v245 = vpop.f32.mrb[0].mxu0
    %v246 = vpop.f32.mrb[0].mxu0
    %v247 = vadd.f32 %v104, %v246
    %v248 = vpop.f32.mrb[0].mxu0
    %249 = vmatprep.mubr.bf16.mxu0 0
    %250 = vmatmul.mubr.bf16.gmra.mrb[0].mxu0 %v76
    %v251 = vpop.f32.mrb[0].mxu0
    %v252 = vadd.f32 %v104, %v251
    %v253 = vpop.f32.mrb[0].mxu0
    %v254 = vpop.f32.mrb[0].mxu0
    %v255 = vadd.f32 %v104, %v254
    %v256 = vpop.f32.mrb[0].mxu0
    %257 = vmatprep.mubr.bf16.mxu0 0
    %258 = vmatmul.mubr.bf16.gmra.mrb[0].mxu0 %v77
    %v259 = vpop.f32.mrb[0].mxu0
    %v260 = vadd.f32 %v104, %v259
    %v261 = vpop.f32.mrb[0].mxu0
    %v262 = vpop.f32.mrb[0].mxu0
    %v263 = vadd.f32 %v104, %v262
    %v264 = vpop.f32.mrb[0].mxu0
    %265 = vmatprep.mubr.bf16.mxu0 0
    %266 = vmatmul.mubr.bf16.gmra.mrb[0].mxu0 %v78
    %v267 = vpop.f32.mrb[0].mxu0
    %v268 = vadd.f32 %v104, %v267
    %v269 = vpop.f32.mrb[0].mxu0
    %v270 = vpop.f32.mrb[0].mxu0
    %v271 = vadd.f32 %v104, %v270
    %v272 = vpop.f32.mrb[0].mxu0
    %273 = vmatprep.mubr.bf16.mxu0 0
    %274 = vmatmul.mubr.bf16.gmra.mrb[0].mxu0 %v79
    %v275 = vpop.f32.mrb[0].mxu0
    %v276 = vadd.f32 %v104, %v275
    %v277 = vpop.f32.mrb[0].mxu0
    %v278 = vpop.f32.mrb[0].mxu0
    %v279 = vadd.f32 %v104, %v278
    %v280 = vpop.f32.mrb[0].mxu0
    %281 = vmatprep.mubr.bf16.mxu0 0
    %282 = vmatmul.mubr.bf16.gmra.mrb[0].mxu0 %v80
    %v283 = vpop.f32.mrb[0].mxu0
    %v284 = vadd.f32 %v104, %v283
    %v285 = vpop.f32.mrb[0].mxu0
    %v286 = vpop.f32.mrb[0].mxu0
    %v287 = vadd.f32 %v104, %v286
    %v288 = vpop.f32.mrb[0].mxu0
    %289 = vmatprep.mubr.bf16.mxu0 0
    %290 = vmatmul.mubr.bf16.gmra.mrb[0].mxu0 %v81
    %v291 = vpop.f32.mrb[0].mxu0
    %v292 = vadd.f32 %v104, %v291
    %v293 = vpop.f32.mrb[0].mxu0
    %v294 = vpop.f32.mrb[0].mxu0
    %v295 = vadd.f32 %v104, %v294
    %v296 = vpop.f32.mrb[0].mxu0
    %297 = vmatprep.mubr.bf16.mxu0 0
    %298 = vmatmul.mubr.bf16.gmra.mrb[0].mxu0 %v82
    %v299 = vpop.f32.mrb[0].mxu0
    %v300 = vadd.f32 %v104, %v299
    %v301 = vpop.f32.mrb[0].mxu0
    %v302 = vpop.f32.mrb[0].mxu0
    %v303 = vadd.f32 %v104, %v302
    %v304 = vpop.f32.mrb[0].mxu0
    %305 = vmatprep.mubr.bf16.mxu0 0
    %306 = vmatmul.mubr.bf16.gmra.mrb[0].mxu0 %v83
    %v307 = vpop.f32.mrb[0].mxu0
    %v308 = vadd.f32 %v104, %v307
    %v309 = vpop.f32.mrb[0].mxu0
    %v310 = vpop.f32.mrb[0].mxu0
    %v311 = vadd.f32 %v104, %v310
    %v312 = vpop.f32.mrb[0].mxu0
    %313 = vdwg.mxu0
    %vm314 = vcmp.gt.f32.partialorder %v188, 0.0
    %vm315 = vcmp.gt.f32.partialorder %v191, 0.0
    %vm316 = vcmp.gt.f32.partialorder %v196, 0.0
    %vm317 = vcmp.gt.f32.partialorder %v199, 0.0
    %vm318 = vcmp.gt.f32.partialorder %v204, 0.0
    %vm319 = vcmp.gt.f32.partialorder %v207, 0.0
    %vm320 = vcmp.gt.f32.partialorder %v212, 0.0
    %vm321 = vcmp.gt.f32.partialorder %v215, 0.0
    %vm322 = vcmp.gt.f32.partialorder %v220, 0.0
    %vm323 = vcmp.gt.f32.partialorder %v223, 0.0
    %vm324 = vcmp.gt.f32.partialorder %v228, 0.0
    %vm325 = vcmp.gt.f32.partialorder %v231, 0.0
    %vm326 = vcmp.gt.f32.partialorder %v236, 0.0
    %vm327 = vcmp.gt.f32.partialorder %v239, 0.0
    %vm328 = vcmp.gt.f32.partialorder %v244, 0.0
    %vm329 = vcmp.gt.f32.partialorder %v247, 0.0
    %vm330 = vcmp.gt.f32.partialorder %v252, 0.0
    %vm331 = vcmp.gt.f32.partialorder %v255, 0.0
    %vm332 = vcmp.gt.f32.partialorder %v260, 0.0
    %vm333 = vcmp.gt.f32.partialorder %v263, 0.0
    %vm334 = vcmp.gt.f32.partialorder %v268, 0.0
    %vm335 = vcmp.gt.f32.partialorder %v271, 0.0
    %vm336 = vcmp.gt.f32.partialorder %v276, 0.0
    %vm337 = vcmp.gt.f32.partialorder %v279, 0.0
    %vm338 = vcmp.gt.f32.partialorder %v284, 0.0
    %vm339 = vcmp.gt.f32.partialorder %v287, 0.0
    %vm340 = vcmp.gt.f32.partialorder %v292, 0.0
    %vm341 = vcmp.gt.f32.partialorder %v295, 0.0
    %vm342 = vcmp.gt.f32.partialorder %v300, 0.0
    %vm343 = vcmp.gt.f32.partialorder %v303, 0.0
    %vm344 = vcmp.gt.f32.partialorder %v308, 0.0
    %vm345 = vcmp.gt.f32.partialorder %v311, 0.0
    %v346 = vmul.f32 %v188, 0.2
    %v347 = vmul.f32 %v191, 0.2
    %v348 = vmul.f32 %v196, 0.2
    %v349 = vmul.f32 %v199, 0.2
    %v350 = vmul.f32 %v204, 0.2
    %v351 = vmul.f32 %v207, 0.2
    %v352 = vmul.f32 %v212, 0.2
    %v353 = vmul.f32 %v215, 0.2
    %v354 = vmul.f32 %v220, 0.2
    %v355 = vmul.f32 %v223, 0.2
    %v356 = vmul.f32 %v228, 0.2
    %v357 = vmul.f32 %v231, 0.2
    %v358 = vmul.f32 %v236, 0.2
    %v359 = vmul.f32 %v239, 0.2
    %v360 = vmul.f32 %v244, 0.2
    %v361 = vmul.f32 %v247, 0.2
    %v362 = vmul.f32 %v252, 0.2
    %v363 = vmul.f32 %v255, 0.2
    %v364 = vmul.f32 %v260, 0.2
    %v365 = vmul.f32 %v263, 0.2
    %v366 = vmul.f32 %v268, 0.2
    %v367 = vmul.f32 %v271, 0.2
    %v368 = vmul.f32 %v276, 0.2
    %v369 = vmul.f32 %v279, 0.2
    %v370 = vmul.f32 %v284, 0.2
    %v371 = vmul.f32 %v287, 0.2
    %v372 = vmul.f32 %v292, 0.2
    %v373 = vmul.f32 %v295, 0.2
    %v374 = vmul.f32 %v300, 0.2
    %v375 = vmul.f32 %v303, 0.2
    %v376 = vmul.f32 %v308, 0.2
    %v377 = vmul.f32 %v311, 0.2
    %v378 = vsel %vm314, %v188, %v346
    %v379 = vsel %vm315, %v191, %v347
    %v380 = vsel %vm316, %v196, %v348
    %v381 = vsel %vm317, %v199, %v349
    %v382 = vsel %vm318, %v204, %v350
    %v383 = vsel %vm319, %v207, %v351
    %v384 = vsel %vm320, %v212, %v352
    %v385 = vsel %vm321, %v215, %v353
    %v386 = vsel %vm322, %v220, %v354
    %v387 = vsel %vm323, %v223, %v355
    %v388 = vsel %vm324, %v228, %v356
    %v389 = vsel %vm325, %v231, %v357
    %v390 = vsel %vm326, %v236, %v358
    %v391 = vsel %vm327, %v239, %v359
    %v392 = vsel %vm328, %v244, %v360
    %v393 = vsel %vm329, %v247, %v361
    %v394 = vsel %vm330, %v252, %v362
    %v395 = vsel %vm331, %v255, %v363
    %v396 = vsel %vm332, %v260, %v364
    %v397 = vsel %vm333, %v263, %v365
    %v398 = vsel %vm334, %v268, %v366
    %v399 = vsel %vm335, %v271, %v367
    %v400 = vsel %vm336, %v276, %v368
    %v401 = vsel %vm337, %v279, %v369
    %v402 = vsel %vm338, %v284, %v370
    %v403 = vsel %vm339, %v287, %v371
    %v404 = vsel %vm340, %v292, %v372
    %v405 = vsel %vm341, %v295, %v373
    %v406 = vsel %vm342, %v300, %v374
    %v407 = vsel %vm343, %v303, %v375
    %v408 = vsel %vm344, %v308, %v376
    %v409 = vsel %vm345, %v311, %v377
    %v410 = vpack.c.bf16 %v379, %v378
    %v411 = vpack.c.bf16 %v381, %v380
    %v412 = vpack.c.bf16 %v383, %v382
    %v413 = vpack.c.bf16 %v385, %v384
    %v414 = vpack.c.bf16 %v387, %v386
    %v415 = vpack.c.bf16 %v389, %v388
    %v416 = vpack.c.bf16 %v391, %v390
    %v417 = vpack.c.bf16 %v393, %v392
    %v418 = vpack.c.bf16 %v395, %v394
    %v419 = vpack.c.bf16 %v397, %v396
    %v420 = vpack.c.bf16 %v399, %v398
    %v421 = vpack.c.bf16 %v401, %v400
    %v422 = vpack.c.bf16 %v403, %v402
    %v423 = vpack.c.bf16 %v405, %v404
    %v424 = vpack.c.bf16 %v407, %v406
    %v425 = vpack.c.bf16 %v409, %v408
    %v426 = vld [vmem:[%s2] sm:$0xf]
    %v427 = vld [vmem:[%s2 + $0x4] sm:$0xf]
    %v428 = vld [vmem:[%s2 + $0x8] sm:$0xf]
    %v429 = vld [vmem:[%s2 + $0xc] sm:$0xf]
    %v430 = vld [vmem:[%s2 + $0x10] sm:$0xf]
    %v431 = vld [vmem:[%s2 + $0x14] sm:$0xf]
    %v432 = vld [vmem:[%s2 + $0x18] sm:$0xf]
    %v433 = vld [vmem:[%s2 + $0x1c] sm:$0xf]
    %v434 = vld [vmem:[%s3 + $0x1] sm:$0x1]
    %v435 = vlaneseq
    %v436 = vshrl.u32 %v435, 7
    %v437 = vsub.s32 0, %v436
    %v438 = vrot.slane %v434, %v437
    %v447 = vunpack.c.l.b16 %v426
    %v448 = vunpack.c.l.b16 %v427
    %v449 = vunpack.c.l.b16 %v428
    %v450 = vunpack.c.l.b16 %v429
    %v451 = vunpack.c.l.b16 %v430
    %v452 = vunpack.c.l.b16 %v431
    %v453 = vunpack.c.l.b16 %v432
    %v454 = vunpack.c.l.b16 %v433
    %v455 = vpack.c.b16 %v448, %v447
    %v456 = vpack.c.b16 %v450, %v449
    %v457 = vpack.c.b16 %v452, %v451
    %v458 = vpack.c.b16 %v454, %v453
    %vm463 = vcmask 523264
    %v465 = vsel %vm463, %v410, 0
    %v468 = vsel %vm463, %v411, 0
    %v471 = vsel %vm463, %v412, 0
    %v474 = vsel %vm463, %v413, 0
    %v477 = vsel %vm463, %v414, 0
    %v480 = vsel %vm463, %v415, 0
    %v483 = vsel %vm463, %v416, 0
    %v486 = vsel %vm463, %v417, 0
    %v489 = vsel %vm463, %v418, 0
    %v492 = vsel %vm463, %v419, 0
    %v495 = vsel %vm463, %v420, 0
    %v498 = vsel %vm463, %v421, 0
    %v501 = vsel %vm463, %v422, 0
    %v504 = vsel %vm463, %v423, 0
    %v507 = vsel %vm463, %v424, 0
    %v510 = vsel %vm463, %v425, 0
    %512 = vmatprep.subr.bf16.mxu0 0
    %513 = vmatpush1.bf16.msra.mxu0 %v455
    %514 = vmatprep.subr.bf16.mxu0 0
    %515 = vmatpush1.bf16.msra.mxu0 %v456
    %516 = vmatprep.subr.bf16.mxu0 0
    %517 = vmatpush1.bf16.msra.mxu0 %v457
    %518 = vmatprep.subr.bf16.mxu0 0
    %519 = vmatpush1.bf16.msra.mxu0 %v458
    %520 = vmatprep.subr.bf16.mxu0 0
    %521 = vmatpush1.bf16.msra.mxu0 0
    %522 = vmatprep.subr.bf16.mxu0 0
    %523 = vmatpush1.bf16.msra.mxu0 0
    %524 = vmatprep.subr.bf16.mxu0 0
    %525 = vmatpush1.bf16.msra.mxu0 0
    %526 = vmatprep.subr.bf16.mxu0 0
    %527 = vmatpush1.bf16.msra.mxu0 0
    %528 = vmatprep.subr.bf16.mxu0 0
    %529 = vmatpush1.bf16.msra.mxu0 0
    %530 = vmatprep.subr.bf16.mxu0 0
    %531 = vmatpush1.bf16.msra.mxu0 0
    %532 = vmatprep.subr.bf16.mxu0 0
    %533 = vmatpush1.bf16.msra.mxu0 0
    %534 = vmatprep.subr.bf16.mxu0 0
    %535 = vmatpush1.bf16.msra.mxu0 0
    %536 = vmatprep.subr.bf16.mxu0 0
    %537 = vmatpush1.bf16.msra.mxu0 0
    %538 = vmatprep.subr.bf16.mxu0 0
    %539 = vmatpush1.bf16.msra.mxu0 0
    %540 = vmatprep.subr.bf16.mxu0 0
    %541 = vmatpush1.bf16.msra.mxu0 0
    %542 = vmatprep.subr.bf16.mxu0 0
    %543 = vmatpush1.bf16.msra.mxu0 0
    %544 = vmatprep.mubr.bf16.mxu0 0
    %545 = vmatmul.mubr.bf16.gmra.mrb[0].mxu0 %v465
    %v546 = vpop.f32.mrb[0].mxu0
    %v547 = vadd.f32 %v438, %v546
    %v548 = vpop.f32.mrb[0].mxu0
    %v549 = vpop.f32.mrb[0].mxu0
    %v550 = vadd.f32 %v438, %v549
    %v551 = vpop.f32.mrb[0].mxu0
    %552 = vmatprep.mubr.bf16.mxu0 0
    %553 = vmatmul.mubr.bf16.gmra.mrb[0].mxu0 %v468
    %v554 = vpop.f32.mrb[0].mxu0
    %v555 = vadd.f32 %v438, %v554
    %v556 = vpop.f32.mrb[0].mxu0
    %v557 = vpop.f32.mrb[0].mxu0
    %v558 = vadd.f32 %v438, %v557
    %v559 = vpop.f32.mrb[0].mxu0
    %560 = vmatprep.mubr.bf16.mxu0 0
    %561 = vmatmul.mubr.bf16.gmra.mrb[0].mxu0 %v471
    %v562 = vpop.f32.mrb[0].mxu0
    %v563 = vadd.f32 %v438, %v562
    %v564 = vpop.f32.mrb[0].mxu0
    %v565 = vpop.f32.mrb[0].mxu0
    %v566 = vadd.f32 %v438, %v565
    %v567 = vpop.f32.mrb[0].mxu0
    %568 = vmatprep.mubr.bf16.mxu0 0
    %569 = vmatmul.mubr.bf16.gmra.mrb[0].mxu0 %v474
    %v570 = vpop.f32.mrb[0].mxu0
    %v571 = vadd.f32 %v438, %v570
    %v572 = vpop.f32.mrb[0].mxu0
    %v573 = vpop.f32.mrb[0].mxu0
    %v574 = vadd.f32 %v438, %v573
    %v575 = vpop.f32.mrb[0].mxu0
    %576 = vmatprep.mubr.bf16.mxu0 0
    %577 = vmatmul.mubr.bf16.gmra.mrb[0].mxu0 %v477
    %v578 = vpop.f32.mrb[0].mxu0
    %v579 = vadd.f32 %v438, %v578
    %v580 = vpop.f32.mrb[0].mxu0
    %v581 = vpop.f32.mrb[0].mxu0
    %v582 = vadd.f32 %v438, %v581
    %v583 = vpop.f32.mrb[0].mxu0
    %584 = vmatprep.mubr.bf16.mxu0 0
    %585 = vmatmul.mubr.bf16.gmra.mrb[0].mxu0 %v480
    %v586 = vpop.f32.mrb[0].mxu0
    %v587 = vadd.f32 %v438, %v586
    %v588 = vpop.f32.mrb[0].mxu0
    %v589 = vpop.f32.mrb[0].mxu0
    %v590 = vadd.f32 %v438, %v589
    %v591 = vpop.f32.mrb[0].mxu0
    %592 = vmatprep.mubr.bf16.mxu0 0
    %593 = vmatmul.mubr.bf16.gmra.mrb[0].mxu0 %v483
    %v594 = vpop.f32.mrb[0].mxu0
    %v595 = vadd.f32 %v438, %v594
    %v596 = vpop.f32.mrb[0].mxu0
    %v597 = vpop.f32.mrb[0].mxu0
    %v598 = vadd.f32 %v438, %v597
    %v599 = vpop.f32.mrb[0].mxu0
    %600 = vmatprep.mubr.bf16.mxu0 0
    %601 = vmatmul.mubr.bf16.gmra.mrb[0].mxu0 %v486
    %v602 = vpop.f32.mrb[0].mxu0
    %v603 = vadd.f32 %v438, %v602
    %v604 = vpop.f32.mrb[0].mxu0
    %v605 = vpop.f32.mrb[0].mxu0
    %v606 = vadd.f32 %v438, %v605
    %v607 = vpop.f32.mrb[0].mxu0
    %608 = vmatprep.mubr.bf16.mxu0 0
    %609 = vmatmul.mubr.bf16.gmra.mrb[0].mxu0 %v489
    %v610 = vpop.f32.mrb[0].mxu0
    %v611 = vadd.f32 %v438, %v610
    %v612 = vpop.f32.mrb[0].mxu0
    %v613 = vpop.f32.mrb[0].mxu0
    %v614 = vadd.f32 %v438, %v613
    %v615 = vpop.f32.mrb[0].mxu0
    %616 = vmatprep.mubr.bf16.mxu0 0
    %617 = vmatmul.mubr.bf16.gmra.mrb[0].mxu0 %v492
    %v618 = vpop.f32.mrb[0].mxu0
    %v619 = vadd.f32 %v438, %v618
    %v620 = vpop.f32.mrb[0].mxu0
    %v621 = vpop.f32.mrb[0].mxu0
    %v622 = vadd.f32 %v438, %v621
    %v623 = vpop.f32.mrb[0].mxu0
    %624 = vmatprep.mubr.bf16.mxu0 0
    %625 = vmatmul.mubr.bf16.gmra.mrb[0].mxu0 %v495
    %v626 = vpop.f32.mrb[0].mxu0
    %v627 = vadd.f32 %v438, %v626
    %v628 = vpop.f32.mrb[0].mxu0
    %v629 = vpop.f32.mrb[0].mxu0
    %v630 = vadd.f32 %v438, %v629
    %v631 = vpop.f32.mrb[0].mxu0
    %632 = vmatprep.mubr.bf16.mxu0 0
    %633 = vmatmul.mubr.bf16.gmra.mrb[0].mxu0 %v498
    %v634 = vpop.f32.mrb[0].mxu0
    %v635 = vadd.f32 %v438, %v634
    %v636 = vpop.f32.mrb[0].mxu0
    %v637 = vpop.f32.mrb[0].mxu0
    %v638 = vadd.f32 %v438, %v637
    %v639 = vpop.f32.mrb[0].mxu0
    %640 = vmatprep.mubr.bf16.mxu0 0
    %641 = vmatmul.mubr.bf16.gmra.mrb[0].mxu0 %v501
    %v642 = vpop.f32.mrb[0].mxu0
    %v643 = vadd.f32 %v438, %v642
    %v644 = vpop.f32.mrb[0].mxu0
    %v645 = vpop.f32.mrb[0].mxu0
    %v646 = vadd.f32 %v438, %v645
    %v647 = vpop.f32.mrb[0].mxu0
    %648 = vmatprep.mubr.bf16.mxu0 0
    %649 = vmatmul.mubr.bf16.gmra.mrb[0].mxu0 %v504
    %v650 = vpop.f32.mrb[0].mxu0
    %v651 = vadd.f32 %v438, %v650
    %v652 = vpop.f32.mrb[0].mxu0
    %v653 = vpop.f32.mrb[0].mxu0
    %v654 = vadd.f32 %v438, %v653
    %v655 = vpop.f32.mrb[0].mxu0
    %656 = vmatprep.mubr.bf16.mxu0 0
    %657 = vmatmul.mubr.bf16.gmra.mrb[0].mxu0 %v507
    %v658 = vpop.f32.mrb[0].mxu0
    %v659 = vadd.f32 %v438, %v658
    %v660 = vpop.f32.mrb[0].mxu0
    %v661 = vpop.f32.mrb[0].mxu0
    %v662 = vadd.f32 %v438, %v661
    %v663 = vpop.f32.mrb[0].mxu0
    %664 = vmatprep.mubr.bf16.mxu0 0
    %665 = vmatmul.mubr.bf16.gmra.mrb[0].mxu0 %v510
    %v666 = vpop.f32.mrb[0].mxu0
    %v667 = vadd.f32 %v438, %v666
    %v668 = vpop.f32.mrb[0].mxu0
    %v669 = vpop.f32.mrb[0].mxu0
    %v670 = vadd.f32 %v438, %v669
    %v671 = vpop.f32.mrb[0].mxu0
    %672 = vdwg.mxu0
    %vm673 = vcmp.gt.f32.partialorder %v547, 0.0
    %vm674 = vcmp.gt.f32.partialorder %v550, 0.0
    %vm675 = vcmp.gt.f32.partialorder %v555, 0.0
    %vm676 = vcmp.gt.f32.partialorder %v558, 0.0
    %vm677 = vcmp.gt.f32.partialorder %v563, 0.0
    %vm678 = vcmp.gt.f32.partialorder %v566, 0.0
    %vm679 = vcmp.gt.f32.partialorder %v571, 0.0
    %vm680 = vcmp.gt.f32.partialorder %v574, 0.0
    %vm681 = vcmp.gt.f32.partialorder %v579, 0.0
    %vm682 = vcmp.gt.f32.partialorder %v582, 0.0
    %vm683 = vcmp.gt.f32.partialorder %v587, 0.0
    %vm684 = vcmp.gt.f32.partialorder %v590, 0.0
    %vm685 = vcmp.gt.f32.partialorder %v595, 0.0
    %vm686 = vcmp.gt.f32.partialorder %v598, 0.0
    %vm687 = vcmp.gt.f32.partialorder %v603, 0.0
    %vm688 = vcmp.gt.f32.partialorder %v606, 0.0
    %vm689 = vcmp.gt.f32.partialorder %v611, 0.0
    %vm690 = vcmp.gt.f32.partialorder %v614, 0.0
    %vm691 = vcmp.gt.f32.partialorder %v619, 0.0
    %vm692 = vcmp.gt.f32.partialorder %v622, 0.0
    %vm693 = vcmp.gt.f32.partialorder %v627, 0.0
    %vm694 = vcmp.gt.f32.partialorder %v630, 0.0
    %vm695 = vcmp.gt.f32.partialorder %v635, 0.0
    %vm696 = vcmp.gt.f32.partialorder %v638, 0.0
    %vm697 = vcmp.gt.f32.partialorder %v643, 0.0
    %vm698 = vcmp.gt.f32.partialorder %v646, 0.0
    %vm699 = vcmp.gt.f32.partialorder %v651, 0.0
    %vm700 = vcmp.gt.f32.partialorder %v654, 0.0
    %vm701 = vcmp.gt.f32.partialorder %v659, 0.0
    %vm702 = vcmp.gt.f32.partialorder %v662, 0.0
    %vm703 = vcmp.gt.f32.partialorder %v667, 0.0
    %vm704 = vcmp.gt.f32.partialorder %v670, 0.0
    %v705 = vmul.f32 %v547, 0.2
    %v706 = vmul.f32 %v550, 0.2
    %v707 = vmul.f32 %v555, 0.2
    %v708 = vmul.f32 %v558, 0.2
    %v709 = vmul.f32 %v563, 0.2
    %v710 = vmul.f32 %v566, 0.2
    %v711 = vmul.f32 %v571, 0.2
    %v712 = vmul.f32 %v574, 0.2
    %v713 = vmul.f32 %v579, 0.2
    %v714 = vmul.f32 %v582, 0.2
    %v715 = vmul.f32 %v587, 0.2
    %v716 = vmul.f32 %v590, 0.2
    %v717 = vmul.f32 %v595, 0.2
    %v718 = vmul.f32 %v598, 0.2
    %v719 = vmul.f32 %v603, 0.2
    %v720 = vmul.f32 %v606, 0.2
    %v721 = vmul.f32 %v611, 0.2
    %v722 = vmul.f32 %v614, 0.2
    %v723 = vmul.f32 %v619, 0.2
    %v724 = vmul.f32 %v622, 0.2
    %v725 = vmul.f32 %v627, 0.2
    %v726 = vmul.f32 %v630, 0.2
    %v727 = vmul.f32 %v635, 0.2
    %v728 = vmul.f32 %v638, 0.2
    %v729 = vmul.f32 %v643, 0.2
    %v730 = vmul.f32 %v646, 0.2
    %v731 = vmul.f32 %v651, 0.2
    %v732 = vmul.f32 %v654, 0.2
    %v733 = vmul.f32 %v659, 0.2
    %v734 = vmul.f32 %v662, 0.2
    %v735 = vmul.f32 %v667, 0.2
    %v736 = vmul.f32 %v670, 0.2
    %v737 = vsel %vm673, %v547, %v705
    %v738 = vsel %vm674, %v550, %v706
    %v739 = vsel %vm675, %v555, %v707
    %v740 = vsel %vm676, %v558, %v708
    %v741 = vsel %vm677, %v563, %v709
    %v742 = vsel %vm678, %v566, %v710
    %v743 = vsel %vm679, %v571, %v711
    %v744 = vsel %vm680, %v574, %v712
    %v745 = vsel %vm681, %v579, %v713
    %v746 = vsel %vm682, %v582, %v714
    %v747 = vsel %vm683, %v587, %v715
    %v748 = vsel %vm684, %v590, %v716
    %v749 = vsel %vm685, %v595, %v717
    %v750 = vsel %vm686, %v598, %v718
    %v751 = vsel %vm687, %v603, %v719
    %v752 = vsel %vm688, %v606, %v720
    %v753 = vsel %vm689, %v611, %v721
    %v754 = vsel %vm690, %v614, %v722
    %v755 = vsel %vm691, %v619, %v723
    %v756 = vsel %vm692, %v622, %v724
    %v757 = vsel %vm693, %v627, %v725
    %v758 = vsel %vm694, %v630, %v726
    %v759 = vsel %vm695, %v635, %v727
    %v760 = vsel %vm696, %v638, %v728
    %v761 = vsel %vm697, %v643, %v729
    %v762 = vsel %vm698, %v646, %v730
    %v763 = vsel %vm699, %v651, %v731
    %v764 = vsel %vm700, %v654, %v732
    %v765 = vsel %vm701, %v659, %v733
    %v766 = vsel %vm702, %v662, %v734
    %v767 = vsel %vm703, %v667, %v735
    %v768 = vsel %vm704, %v670, %v736
    %v769 = vld [vmem:[%s3 + $0x2] sm:$0x1]
    %v770 = vlaneseq
    %v771 = vshrl.u32 %v770, 7
    %v772 = vsub.s32 0, %v771
    %v773 = vrot.slane %v769, %v772
    %v774 = vmul.f32 %v737, %v773
    %v775 = vmul.f32 %v738, %v773
    %v776 = vmul.f32 %v739, %v773
    %v777 = vmul.f32 %v740, %v773
    %v778 = vmul.f32 %v741, %v773
    %v779 = vmul.f32 %v742, %v773
    %v780 = vmul.f32 %v743, %v773
    %v781 = vmul.f32 %v744, %v773
    %v782 = vmul.f32 %v745, %v773
    %v783 = vmul.f32 %v746, %v773
    %v784 = vmul.f32 %v747, %v773
    %v785 = vmul.f32 %v748, %v773
    %v786 = vmul.f32 %v749, %v773
    %v787 = vmul.f32 %v750, %v773
    %v788 = vmul.f32 %v751, %v773
    %v789 = vmul.f32 %v752, %v773
    %v790 = vmul.f32 %v753, %v773
    %v791 = vmul.f32 %v754, %v773
    %v792 = vmul.f32 %v755, %v773
    %v793 = vmul.f32 %v756, %v773
    %v794 = vmul.f32 %v757, %v773
    %v795 = vmul.f32 %v758, %v773
    %v796 = vmul.f32 %v759, %v773
    %v797 = vmul.f32 %v760, %v773
    %v798 = vmul.f32 %v761, %v773
    %v799 = vmul.f32 %v762, %v773
    %v800 = vmul.f32 %v763, %v773
    %v801 = vmul.f32 %v764, %v773
    %v802 = vmul.f32 %v765, %v773
    %v803 = vmul.f32 %v766, %v773
    %v804 = vmul.f32 %v767, %v773
    %v805 = vmul.f32 %v768, %v773
    %v806 = vsel %vm463, %v774, 0.0
    %807 = vadd.xlane.f32.xlu0 %v806
    %v808 = vpop.xlane.xlu0 %807
    %v809 = vsel %vm463, %v775, 0.0
    %810 = vadd.xlane.f32.xlu0 %v809
    %v811 = vpop.xlane.xlu0 %810
    %v812 = vsel %vm463, %v776, 0.0
    %813 = vadd.xlane.f32.xlu0 %v812
    %v814 = vpop.xlane.xlu0 %813
    %v815 = vsel %vm463, %v777, 0.0
    %816 = vadd.xlane.f32.xlu0 %v815
    %v817 = vpop.xlane.xlu0 %816
    %v818 = vsel %vm463, %v778, 0.0
    %819 = vadd.xlane.f32.xlu0 %v818
    %v820 = vpop.xlane.xlu0 %819
    %v821 = vsel %vm463, %v779, 0.0
    %822 = vadd.xlane.f32.xlu0 %v821
    %v823 = vpop.xlane.xlu0 %822
    %v824 = vsel %vm463, %v780, 0.0
    %825 = vadd.xlane.f32.xlu0 %v824
    %v826 = vpop.xlane.xlu0 %825
    %v827 = vsel %vm463, %v781, 0.0
    %828 = vadd.xlane.f32.xlu0 %v827
    %v829 = vpop.xlane.xlu0 %828
    %v830 = vsel %vm463, %v782, 0.0
    %831 = vadd.xlane.f32.xlu0 %v830
    %v832 = vpop.xlane.xlu0 %831
    %v833 = vsel %vm463, %v783, 0.0
    %834 = vadd.xlane.f32.xlu0 %v833
    %v835 = vpop.xlane.xlu0 %834
    %v836 = vsel %vm463, %v784, 0.0
    %837 = vadd.xlane.f32.xlu0 %v836
    %v838 = vpop.xlane.xlu0 %837
    %v839 = vsel %vm463, %v785, 0.0
    %840 = vadd.xlane.f32.xlu0 %v839
    %v841 = vpop.xlane.xlu0 %840
    %v842 = vsel %vm463, %v786, 0.0
    %843 = vadd.xlane.f32.xlu0 %v842
    %v844 = vpop.xlane.xlu0 %843
    %v845 = vsel %vm463, %v787, 0.0
    %846 = vadd.xlane.f32.xlu0 %v845
    %v847 = vpop.xlane.xlu0 %846
    %v848 = vsel %vm463, %v788, 0.0
    %849 = vadd.xlane.f32.xlu0 %v848
    %v850 = vpop.xlane.xlu0 %849
    %v851 = vsel %vm463, %v789, 0.0
    %852 = vadd.xlane.f32.xlu0 %v851
    %v853 = vpop.xlane.xlu0 %852
    %v854 = vsel %vm463, %v790, 0.0
    %855 = vadd.xlane.f32.xlu0 %v854
    %v856 = vpop.xlane.xlu0 %855
    %v857 = vsel %vm463, %v791, 0.0
    %858 = vadd.xlane.f32.xlu0 %v857
    %v859 = vpop.xlane.xlu0 %858
    %v860 = vsel %vm463, %v792, 0.0
    %861 = vadd.xlane.f32.xlu0 %v860
    %v862 = vpop.xlane.xlu0 %861
    %v863 = vsel %vm463, %v793, 0.0
    %864 = vadd.xlane.f32.xlu0 %v863
    %v865 = vpop.xlane.xlu0 %864
    %v866 = vsel %vm463, %v794, 0.0
    %867 = vadd.xlane.f32.xlu0 %v866
    %v868 = vpop.xlane.xlu0 %867
    %v869 = vsel %vm463, %v795, 0.0
    %870 = vadd.xlane.f32.xlu0 %v869
    %v871 = vpop.xlane.xlu0 %870
    %v872 = vsel %vm463, %v796, 0.0
    %873 = vadd.xlane.f32.xlu0 %v872
    %v874 = vpop.xlane.xlu0 %873
    %v875 = vsel %vm463, %v797, 0.0
    %876 = vadd.xlane.f32.xlu0 %v875
    %v877 = vpop.xlane.xlu0 %876
    %v878 = vsel %vm463, %v798, 0.0
    %879 = vadd.xlane.f32.xlu0 %v878
    %v880 = vpop.xlane.xlu0 %879
    %v881 = vsel %vm463, %v799, 0.0
    %882 = vadd.xlane.f32.xlu0 %v881
    %v883 = vpop.xlane.xlu0 %882
    %v884 = vsel %vm463, %v800, 0.0
    %885 = vadd.xlane.f32.xlu0 %v884
    %v886 = vpop.xlane.xlu0 %885
    %v887 = vsel %vm463, %v801, 0.0
    %888 = vadd.xlane.f32.xlu0 %v887
    %v889 = vpop.xlane.xlu0 %888
    %v890 = vsel %vm463, %v802, 0.0
    %891 = vadd.xlane.f32.xlu0 %v890
    %v892 = vpop.xlane.xlu0 %891
    %v893 = vsel %vm463, %v803, 0.0
    %894 = vadd.xlane.f32.xlu0 %v893
    %v895 = vpop.xlane.xlu0 %894
    %v896 = vsel %vm463, %v804, 0.0
    %897 = vadd.xlane.f32.xlu0 %v896
    %v898 = vpop.xlane.xlu0 %897
    %v899 = vsel %vm463, %v805, 0.0
    %900 = vadd.xlane.f32.xlu0 %v899
    %v901 = vpop.xlane.xlu0 %900
    %s902 = sld [smem:[#allocation2]]
    %v903 = vstv %s902
    %v904 = vadd.f32 %v808, %v903
    %v905 = vadd.f32 %v811, %v903
    %v906 = vadd.f32 %v814, %v903
    %v907 = vadd.f32 %v817, %v903
    %v908 = vadd.f32 %v820, %v903
    %v909 = vadd.f32 %v823, %v903
    %v910 = vadd.f32 %v826, %v903
    %v911 = vadd.f32 %v829, %v903
    %v912 = vadd.f32 %v832, %v903
    %v913 = vadd.f32 %v835, %v903
    %v914 = vadd.f32 %v838, %v903
    %v915 = vadd.f32 %v841, %v903
    %v916 = vadd.f32 %v844, %v903
    %v917 = vadd.f32 %v847, %v903
    %v918 = vadd.f32 %v850, %v903
    %v919 = vadd.f32 %v853, %v903
    %v920 = vadd.f32 %v856, %v903
    %v921 = vadd.f32 %v859, %v903
    %v922 = vadd.f32 %v862, %v903
    %v923 = vadd.f32 %v865, %v903
    %v924 = vadd.f32 %v868, %v903
    %v925 = vadd.f32 %v871, %v903
    %v926 = vadd.f32 %v874, %v903
    %v927 = vadd.f32 %v877, %v903
    %v928 = vadd.f32 %v880, %v903
    %v929 = vadd.f32 %v883, %v903
    %v930 = vadd.f32 %v886, %v903
    %v931 = vadd.f32 %v889, %v903
    %v932 = vadd.f32 %v892, %v903
    %v933 = vadd.f32 %v895, %v903
    %v934 = vadd.f32 %v898, %v903
    %v935 = vadd.f32 %v901, %v903
    %v936 = vxor.u32 %v904, 2147483648
    %v937 = vxor.u32 %v905, 2147483648
    %v938 = vxor.u32 %v906, 2147483648
    %v939 = vxor.u32 %v907, 2147483648
    %v940 = vxor.u32 %v908, 2147483648
    %v941 = vxor.u32 %v909, 2147483648
    %v942 = vxor.u32 %v910, 2147483648
    %v943 = vxor.u32 %v911, 2147483648
    %v944 = vxor.u32 %v912, 2147483648
    %v945 = vxor.u32 %v913, 2147483648
    %v946 = vxor.u32 %v914, 2147483648
    %v947 = vxor.u32 %v915, 2147483648
    %v948 = vxor.u32 %v916, 2147483648
    %v949 = vxor.u32 %v917, 2147483648
    %v950 = vxor.u32 %v918, 2147483648
    %v951 = vxor.u32 %v919, 2147483648
    %v952 = vxor.u32 %v920, 2147483648
    %v953 = vxor.u32 %v921, 2147483648
    %v954 = vxor.u32 %v922, 2147483648
    %v955 = vxor.u32 %v923, 2147483648
    %v956 = vxor.u32 %v924, 2147483648
    %v957 = vxor.u32 %v925, 2147483648
    %v958 = vxor.u32 %v926, 2147483648
    %v959 = vxor.u32 %v927, 2147483648
    %v960 = vxor.u32 %v928, 2147483648
    %v961 = vxor.u32 %v929, 2147483648
    %v962 = vxor.u32 %v930, 2147483648
    %v963 = vxor.u32 %v931, 2147483648
    %v964 = vxor.u32 %v932, 2147483648
    %v965 = vxor.u32 %v933, 2147483648
    %v966 = vxor.u32 %v934, 2147483648
    %v967 = vxor.u32 %v935, 2147483648
    %v968 = vmul.f32 %v936, 1.442695
    %v969 = vpow.pop %v968
    %v970 = vmul.f32 %v937, 1.442695
    %v971 = vpow.pop %v970
    %v972 = vmul.f32 %v938, 1.442695
    %v973 = vpow.pop %v972
    %v974 = vmul.f32 %v939, 1.442695
    %v975 = vpow.pop %v974
    %v976 = vmul.f32 %v940, 1.442695
    %v977 = vpow.pop %v976
    %v978 = vmul.f32 %v941, 1.442695
    %v979 = vpow.pop %v978
    %v980 = vmul.f32 %v942, 1.442695
    %v981 = vpow.pop %v980
    %v982 = vmul.f32 %v943, 1.442695
    %v983 = vpow.pop %v982
    %v984 = vmul.f32 %v944, 1.442695
    %v985 = vpow.pop %v984
    %v986 = vmul.f32 %v945, 1.442695
    %v987 = vpow.pop %v986
    %v988 = vmul.f32 %v946, 1.442695
    %v989 = vpow.pop %v988
    %v990 = vmul.f32 %v947, 1.442695
    %v991 = vpow.pop %v990
    %v992 = vmul.f32 %v948, 1.442695
    %v993 = vpow.pop %v992
    %v994 = vmul.f32 %v949, 1.442695
    %v995 = vpow.pop %v994
    %v996 = vmul.f32 %v950, 1.442695
    %v997 = vpow.pop %v996
    %v998 = vmul.f32 %v951, 1.442695
    %v999 = vpow.pop %v998
    %v1000 = vmul.f32 %v952, 1.442695
    %v1001 = vpow.pop %v1000
    %v1002 = vmul.f32 %v953, 1.442695
    %v1003 = vpow.pop %v1002
    %v1004 = vmul.f32 %v954, 1.442695
    %v1005 = vpow.pop %v1004
    %v1006 = vmul.f32 %v955, 1.442695
    %v1007 = vpow.pop %v1006
    %v1008 = vmul.f32 %v956, 1.442695
    %v1009 = vpow.pop %v1008
    %v1010 = vmul.f32 %v957, 1.442695
    %v1011 = vpow.pop %v1010
    %v1012 = vmul.f32 %v958, 1.442695
    %v1013 = vpow.pop %v1012
    %v1014 = vmul.f32 %v959, 1.442695
    %v1015 = vpow.pop %v1014
    %v1016 = vmul.f32 %v960, 1.442695
    %v1017 = vpow.pop %v1016
    %v1018 = vmul.f32 %v961, 1.442695
    %v1019 = vpow.pop %v1018
    %v1020 = vmul.f32 %v962, 1.442695
    %v1021 = vpow.pop %v1020
    %v1022 = vmul.f32 %v963, 1.442695
    %v1023 = vpow.pop %v1022
    %v1024 = vmul.f32 %v964, 1.442695
    %v1025 = vpow.pop %v1024
    %v1026 = vmul.f32 %v965, 1.442695
    %v1027 = vpow.pop %v1026
    %v1028 = vmul.f32 %v966, 1.442695
    %v1029 = vpow.pop %v1028
    %v1030 = vmul.f32 %v967, 1.442695
    %v1031 = vpow.pop %v1030
    %v1032 = vadd.f32 %v969, 1.0
    %v1033 = vadd.f32 %v971, 1.0
    %v1034 = vadd.f32 %v973, 1.0
    %v1035 = vadd.f32 %v975, 1.0
    %v1036 = vadd.f32 %v977, 1.0
    %v1037 = vadd.f32 %v979, 1.0
    %v1038 = vadd.f32 %v981, 1.0
    %v1039 = vadd.f32 %v983, 1.0
    %v1040 = vadd.f32 %v985, 1.0
    %v1041 = vadd.f32 %v987, 1.0
    %v1042 = vadd.f32 %v989, 1.0
    %v1043 = vadd.f32 %v991, 1.0
    %v1044 = vadd.f32 %v993, 1.0
    %v1045 = vadd.f32 %v995, 1.0
    %v1046 = vadd.f32 %v997, 1.0
    %v1047 = vadd.f32 %v999, 1.0
    %v1048 = vadd.f32 %v1001, 1.0
    %v1049 = vadd.f32 %v1003, 1.0
    %v1050 = vadd.f32 %v1005, 1.0
    %v1051 = vadd.f32 %v1007, 1.0
    %v1052 = vadd.f32 %v1009, 1.0
    %v1053 = vadd.f32 %v1011, 1.0
    %v1054 = vadd.f32 %v1013, 1.0
    %v1055 = vadd.f32 %v1015, 1.0
    %v1056 = vadd.f32 %v1017, 1.0
    %v1057 = vadd.f32 %v1019, 1.0
    %v1058 = vadd.f32 %v1021, 1.0
    %v1059 = vadd.f32 %v1023, 1.0
    %v1060 = vadd.f32 %v1025, 1.0
    %v1061 = vadd.f32 %v1027, 1.0
    %v1062 = vadd.f32 %v1029, 1.0
    %v1063 = vadd.f32 %v1031, 1.0
    %v1064 = vrcp.pop %v1032
    %v1065 = vmul.f32 1.0, %v1064
    %v1066 = vrcp.pop %v1033
    %v1067 = vmul.f32 1.0, %v1066
    %v1068 = vrcp.pop %v1034
    %v1069 = vmul.f32 1.0, %v1068
    %v1070 = vrcp.pop %v1035
    %v1071 = vmul.f32 1.0, %v1070
    %v1072 = vrcp.pop %v1036
    %v1073 = vmul.f32 1.0, %v1072
    %v1074 = vrcp.pop %v1037
    %v1075 = vmul.f32 1.0, %v1074
    %v1076 = vrcp.pop %v1038
    %v1077 = vmul.f32 1.0, %v1076
    %v1078 = vrcp.pop %v1039
    %v1079 = vmul.f32 1.0, %v1078
    %v1080 = vrcp.pop %v1040
    %v1081 = vmul.f32 1.0, %v1080
    %v1082 = vrcp.pop %v1041
    %v1083 = vmul.f32 1.0, %v1082
    %v1084 = vrcp.pop %v1042
    %v1085 = vmul.f32 1.0, %v1084
    %v1086 = vrcp.pop %v1043
    %v1087 = vmul.f32 1.0, %v1086
    %v1088 = vrcp.pop %v1044
    %v1089 = vmul.f32 1.0, %v1088
    %v1090 = vrcp.pop %v1045
    %v1091 = vmul.f32 1.0, %v1090
    %v1092 = vrcp.pop %v1046
    %v1093 = vmul.f32 1.0, %v1092
    %v1094 = vrcp.pop %v1047
    %v1095 = vmul.f32 1.0, %v1094
    %v1096 = vrcp.pop %v1048
    %v1097 = vmul.f32 1.0, %v1096
    %v1098 = vrcp.pop %v1049
    %v1099 = vmul.f32 1.0, %v1098
    %v1100 = vrcp.pop %v1050
    %v1101 = vmul.f32 1.0, %v1100
    %v1102 = vrcp.pop %v1051
    %v1103 = vmul.f32 1.0, %v1102
    %v1104 = vrcp.pop %v1052
    %v1105 = vmul.f32 1.0, %v1104
    %v1106 = vrcp.pop %v1053
    %v1107 = vmul.f32 1.0, %v1106
    %v1108 = vrcp.pop %v1054
    %v1109 = vmul.f32 1.0, %v1108
    %v1110 = vrcp.pop %v1055
    %v1111 = vmul.f32 1.0, %v1110
    %v1112 = vrcp.pop %v1056
    %v1113 = vmul.f32 1.0, %v1112
    %v1114 = vrcp.pop %v1057
    %v1115 = vmul.f32 1.0, %v1114
    %v1116 = vrcp.pop %v1058
    %v1117 = vmul.f32 1.0, %v1116
    %v1118 = vrcp.pop %v1059
    %v1119 = vmul.f32 1.0, %v1118
    %v1120 = vrcp.pop %v1060
    %v1121 = vmul.f32 1.0, %v1120
    %v1122 = vrcp.pop %v1061
    %v1123 = vmul.f32 1.0, %v1122
    %v1124 = vrcp.pop %v1062
    %v1125 = vmul.f32 1.0, %v1124
    %v1126 = vrcp.pop %v1063
    %v1127 = vmul.f32 1.0, %v1126
    %vm1128 = vcmask 7168
    %1129 = vst.msk [vmem:[%s5] sm:$0xff] %vm1128, %v1065
    %1130 = vst.msk [vmem:[%s5 + $0x8] sm:$0xff] %vm1128, %v1067
    %1131 = vst.msk [vmem:[%s5 + $0x10] sm:$0xff] %vm1128, %v1069
    %1132 = vst.msk [vmem:[%s5 + $0x18] sm:$0xff] %vm1128, %v1071
    %1133 = vst.msk [vmem:[%s5 + $0x20] sm:$0xff] %vm1128, %v1073
    %1134 = vst.msk [vmem:[%s5 + $0x28] sm:$0xff] %vm1128, %v1075
    %1135 = vst.msk [vmem:[%s5 + $0x30] sm:$0xff] %vm1128, %v1077
    %1136 = vst.msk [vmem:[%s5 + $0x38] sm:$0xff] %vm1128, %v1079
    %1137 = vst.msk [vmem:[%s5 + $0x40] sm:$0xff] %vm1128, %v1081
    %1138 = vst.msk [vmem:[%s5 + $0x48] sm:$0xff] %vm1128, %v1083
    %1139 = vst.msk [vmem:[%s5 + $0x50] sm:$0xff] %vm1128, %v1085
    %1140 = vst.msk [vmem:[%s5 + $0x58] sm:$0xff] %vm1128, %v1087
    %1141 = vst.msk [vmem:[%s5 + $0x60] sm:$0xff] %vm1128, %v1089
    %1142 = vst.msk [vmem:[%s5 + $0x68] sm:$0xff] %vm1128, %v1091
    %1143 = vst.msk [vmem:[%s5 + $0x70] sm:$0xff] %vm1128, %v1093
    %1144 = vst.msk [vmem:[%s5 + $0x78] sm:$0xff] %vm1128, %v1095
    %1145 = vst.msk [vmem:[%s5 + $0x80] sm:$0xff] %vm1128, %v1097
    %1146 = vst.msk [vmem:[%s5 + $0x88] sm:$0xff] %vm1128, %v1099
    %1147 = vst.msk [vmem:[%s5 + $0x90] sm:$0xff] %vm1128, %v1101
    %1148 = vst.msk [vmem:[%s5 + $0x98] sm:$0xff] %vm1128, %v1103
    %1149 = vst.msk [vmem:[%s5 + $0xa0] sm:$0xff] %vm1128, %v1105
    %1150 = vst.msk [vmem:[%s5 + $0xa8] sm:$0xff] %vm1128, %v1107
    %1151 = vst.msk [vmem:[%s5 + $0xb0] sm:$0xff] %vm1128, %v1109
    %1152 = vst.msk [vmem:[%s5 + $0xb8] sm:$0xff] %vm1128, %v1111
    %1153 = vst.msk [vmem:[%s5 + $0xc0] sm:$0xff] %vm1128, %v1113
    %1154 = vst.msk [vmem:[%s5 + $0xc8] sm:$0xff] %vm1128, %v1115
    %1155 = vst.msk [vmem:[%s5 + $0xd0] sm:$0xff] %vm1128, %v1117
    %1156 = vst.msk [vmem:[%s5 + $0xd8] sm:$0xff] %vm1128, %v1119
    %1157 = vst.msk [vmem:[%s5 + $0xe0] sm:$0xff] %vm1128, %v1121
    %1158 = vst.msk [vmem:[%s5 + $0xe8] sm:$0xff] %vm1128, %v1123
    %1159 = vst.msk [vmem:[%s5 + $0xf0] sm:$0xff] %vm1128, %v1125
    %1160 = vst.msk [vmem:[%s5 + $0xf8] sm:$0xff] %vm1128, %v1127
    // Predicated region
    $region26: #{tpu_custom_call.1} parent=1 // pred_check
      _
    $region27: #{tpu_custom_call.1} parent=1 // pred_check_branch
      %1162 = sbr.rel (0) target = $region29
    $region28: #{tpu_custom_call.1} parent=1 // pred_region
      _
    $region29: #{tpu_custom_call.1} parent=1 // pred_fallthru
      _
    // Predicated region
    $region30: #{tpu_custom_call.1} parent=1 // pred_check
      _
    $region31: #{tpu_custom_call.1} parent=1 // pred_check_branch
      %1164 = sbr.rel (0) target = $region33
    $region32: #{tpu_custom_call.1} parent=1 // pred_region
      _
    $region33: #{tpu_custom_call.1} parent=1 // pred_fallthru
      _
    %1165 = vsyncpa [#allocation4], 1

</llo_original>
